<compile_context>
chip_gen: v5e
topology: v5e:2x2
jax: 0.10.0
libtpu: 0.0.40
codegen_flags: <defaults>
</compile_context>

<pallas_src>
import functools

import jax
import jax.numpy as jnp
from jax.experimental import pallas as pl
from jax.experimental.pallas import tpu as pltpu

LANES = 128      # every feature dim is zero-padded to this (lane-dense)
ROW_TILE = 512   # A_gin tile edge for large graphs (multiple of 8 and 128)


def _round_up(x, m):
    return ((x + m - 1) // m) * m


def _gin_layer_kernel(a_ref, x_ref, w1_ref, b1_ref, w2_ref, b2_ref,
                      s_ref, t_ref, o_ref, acc_ref, *, normalize):
    """One GIN layer for a (tm, LANES) row-block of nodes.

    grid = (row_blocks, k_blocks); k is the source-node contraction axis of
    A_gin.  acc accumulates A_gin[rows, k] @ X[k, :] in f32; on the last k
    step the MLP -> ELU -> BN (-> L2 normalize) epilogue runs and stores the
    lane-dense output row-block.
    """
    k = pl.program_id(1)

    @pl.when(k == 0)
    def _():
        acc_ref[...] = jnp.zeros_like(acc_ref)

    # Aggregation matmul: bf16 operands, f32 accumulation on the MXU.
    acc_ref[...] += jnp.dot(a_ref[...],                       # already bf16
                            x_ref[...].astype(jnp.bfloat16),
                            preferred_element_type=jnp.float32)

    @pl.when(k == pl.num_programs(1) - 1)
    def _():
        h = acc_ref[...]                                      # f32 (tm, LANES)
        # MLP: Linear -> ReLU -> Linear (bias adds / activations in f32).
        z = jnp.dot(h.astype(jnp.bfloat16),
                    w1_ref[...].astype(jnp.bfloat16),
                    preferred_element_type=jnp.float32) + b1_ref[...]
        z = jnp.maximum(z, 0.0)
        z = jnp.dot(z.astype(jnp.bfloat16),
                    w2_ref[...].astype(jnp.bfloat16),
                    preferred_element_type=jnp.float32) + b2_ref[...]
        # ELU (alpha = 1).
        z = jnp.where(z > 0.0, z, jnp.exp(jnp.minimum(z, 0.0)) - 1.0)
        # Eval-mode BatchNorm folded to per-feature scale/shift
        # (identity scale/shift for the layers without BN in the forward).
        z = z * s_ref[...] + t_ref[...]
        if normalize:  # final F.normalize(p=2, dim=1, eps=5e-4)
            nrm = jnp.sqrt(jnp.sum(z * z, axis=-1, keepdims=True))
            z = z * pl.reciprocal(jnp.maximum(nrm, 0.0005), approx=True)
        o_ref[...] = z


def _gin_layer(a_bf16, x, w1, b1, w2, b2, scale, shift, *, normalize, tm, tk):
    np_, fp = x.shape
    grid = (np_ // tm, np_ // tk)
    kernel = functools.partial(_gin_layer_kernel, normalize=normalize)
    return pl.pallas_call(
        kernel,
        out_shape=jax.ShapeDtypeStruct((np_, fp), jnp.float32),
        grid=grid,
        in_specs=[
            pl.BlockSpec((tm, tk), lambda i, k: (i, k)),    # A_gin tile (bf16)
            pl.BlockSpec((tk, fp), lambda i, k: (k, 0)),    # X k-tile
            pl.BlockSpec((fp, fp), lambda i, k: (0, 0)),    # W1 (padded)
            pl.BlockSpec((1, fp), lambda i, k: (0, 0)),     # b1
            pl.BlockSpec((fp, fp), lambda i, k: (0, 0)),    # W2 (padded)
            pl.BlockSpec((1, fp), lambda i, k: (0, 0)),     # b2
            pl.BlockSpec((1, fp), lambda i, k: (0, 0)),     # BN scale
            pl.BlockSpec((1, fp), lambda i, k: (0, 0)),     # BN shift
        ],
        out_specs=pl.BlockSpec((tm, fp), lambda i, k: (i, 0)),
        scratch_shapes=[pltpu.VMEM((tm, fp), jnp.float32)],
        compiler_params=pltpu.CompilerParams(
            dimension_semantics=("parallel", "arbitrary"),
            vmem_limit_bytes=32 * 1024 * 1024,
        ),
    )(a_bf16, x, w1, b1, w2, b2, scale, shift)


def build_gin_adjacency(edge_index, num_nodes, eps=0.0):
    """Dense A_gin[target, source] = multi-edge counts + (1 + eps) * I."""
    src, dst = edge_index[0], edge_index[1]
    adj = jnp.zeros((num_nodes, num_nodes), dtype=jnp.float32)
    adj = adj.at[dst, src].add(1.0)  # sum aggregation: multi-edges accumulate
    return adj + (1.0 + eps) * jnp.eye(num_nodes, dtype=jnp.float32)


def _pad2(a, rows, cols):
    out = jnp.zeros((rows, cols), a.dtype)
    return out.at[: a.shape[0], : a.shape[1]].set(a)


def encoder_gin_pallas(x, a_gin, layers):
    """layers: list of dicts with w1, b1, w2, b2, scale, shift (unpadded f32)."""
    n, _ = x.shape
    f_out = layers[-1]["w2"].shape[1]

    if n <= ROW_TILE:
        np_ = _round_up(n, 8)
        tm = tk = np_           # single block per axis; blocks == full dims
    else:
        tm = tk = ROW_TILE
        np_ = _round_up(n, ROW_TILE)

    a_p = _pad2(a_gin, np_, np_).astype(jnp.bfloat16)  # exact for int counts
    h = _pad2(x, np_, LANES)

    n_layers = len(layers)
    for li, p in enumerate(layers):
        w1 = _pad2(p["w1"], LANES, LANES)
        b1 = _pad2(p["b1"].reshape(1, -1), 1, LANES)
        w2 = _pad2(p["w2"], LANES, LANES)
        b2 = _pad2(p["b2"].reshape(1, -1), 1, LANES)
        sc = _pad2(p["scale"].reshape(1, -1), 1, LANES)
        sh = _pad2(p["shift"].reshape(1, -1), 1, LANES)
        h = _gin_layer(a_p, h, w1, b1, w2, b2, sc, sh,
                       normalize=(li == n_layers - 1), tm=tm, tk=tk)

    return h[:n, :f_out]


def encoder_gin_ref(x, a_gin, layers):
    """Plain-JAX f32 reference with identical semantics."""
    h = x
    for p in layers:
        agg = a_gin @ h
        z = jnp.maximum(agg @ p["w1"] + p["b1"], 0.0)
        z = z @ p["w2"] + p["b2"]
        z = jax.nn.elu(z)
        z = z * p["scale"] + p["shift"]
        h = z
    nrm = jnp.sqrt(jnp.sum(h * h, axis=-1, keepdims=True))
    return h / jnp.maximum(nrm, 0.0005)


if __name__ == "__main__":
    key = jax.random.PRNGKey(0)
    k_x, k_e, k_layers = jax.random.split(key, 3)
    layer_keys = jax.random.split(k_layers, 5)

    num_nodes = 16
    in_channels = 8
    out_channels = 32          # module default
    num_edges = 40
    bn_eps = 1e-5              # BatchNorm1d default eps

    x = jax.random.normal(k_x, (num_nodes, in_channels), dtype=jnp.float32)
    edge_index = jax.random.randint(k_e, (2, num_edges), 0, num_nodes, jnp.int32)
    a_gin = build_gin_adjacency(edge_index, num_nodes, eps=0.0)

    def glorot(k, shape):
        fan_in, fan_out = shape
        lim = jnp.sqrt(6.0 / (fan_in + fan_out))
        return jax.random.uniform(k, shape, jnp.float32, -lim, lim)

    def make_layer(k, d_in, d_out, with_bn):
        k1, k2, k3, k4, k5, k6, k7, k8 = jax.random.split(k, 8)
        w1 = glorot(k1, (d_in, d_out))
        b1 = 0.05 * jax.random.normal(k2, (d_out,), jnp.float32)
        w2 = glorot(k3, (d_out, d_out))
        b2 = 0.05 * jax.random.normal(k4, (d_out,), jnp.float32)
        if with_bn:  # eval-mode BatchNorm1d folded into scale/shift
            gamma = 1.0 + 0.1 * jax.random.normal(k5, (d_out,), jnp.float32)
            beta = 0.1 * jax.random.normal(k6, (d_out,), jnp.float32)
            mean = 0.1 * jax.random.normal(k7, (d_out,), jnp.float32)
            var = 0.5 + jax.random.uniform(k8, (d_out,), jnp.float32)
            scale = gamma / jnp.sqrt(var + bn_eps)
            shift = beta - mean * scale
        else:
            scale = jnp.ones((d_out,), jnp.float32)
            shift = jnp.zeros((d_out,), jnp.float32)
        return dict(w1=w1, b1=b1, w2=w2, b2=b2, scale=scale, shift=shift)

    # forward uses bn1, bn3, bn5 only (bn2 / bn4 are defined but not applied).
    bn_flags = [True, False, True, False, True]
    layers = []
    d_in = in_channels
    for lk, with_bn in zip(layer_keys, bn_flags):
        layers.append(make_layer(lk, d_in, out_channels, with_bn))
        d_in = out_channels

    run = jax.jit(encoder_gin_pallas)
    out = run(x, a_gin, layers)
    out = jax.block_until_ready(out)

    ref = encoder_gin_ref(x, a_gin, layers)
    assert out.shape == (num_nodes, out_channels)
    max_err = float(jnp.max(jnp.abs(out - ref)))
    assert jnp.allclose(out, ref, atol=3e-2, rtol=3e-2), (
        f"mismatch vs. JAX reference (max abs err {max_err})"
    )

    print("KERNEL_OK")
</pallas_src>

<mosaic_0001>
module attributes {stable_mosaic.version = 11 : i64} {
  func.func @_gin_layer_kernel(%arg0: i32, %arg1: i32, %arg2: memref<16x16xbf16, #tpu.memory_space<vmem>>, %arg3: memref<16x128xf32, #tpu.memory_space<vmem>>, %arg4: memref<128x128xf32, #tpu.memory_space<vmem>>, %arg5: memref<1x128xf32, #tpu.memory_space<vmem>>, %arg6: memref<128x128xf32, #tpu.memory_space<vmem>>, %arg7: memref<1x128xf32, #tpu.memory_space<vmem>>, %arg8: memref<1x128xf32, #tpu.memory_space<vmem>>, %arg9: memref<1x128xf32, #tpu.memory_space<vmem>>, %arg10: memref<16x128xf32, #tpu.memory_space<vmem>>, %arg11: memref<16x128xf32, #tpu.memory_space<vmem>>) attributes {dimension_semantics = [#tpu.dimension_semantics<parallel>, #tpu.dimension_semantics<arbitrary>], iteration_bounds = array<i64: 1, 1>, scalar_prefetch = 0 : i64, scratch_operands = 1 : i64, tpu.core_type = #tpu.core_type<tc>, window_params = [{transform_indices = @transform_0, window_bounds = array<i64: 16, 16>}, {transform_indices = @transform_1, window_bounds = array<i64: 16, 128>}, {pipeline_mode = #tpu.pipeline_mode<synchronous>, transform_indices = @transform_2, window_bounds = array<i64: 128, 128>}, {pipeline_mode = #tpu.pipeline_mode<synchronous>, transform_indices = @transform_3, window_bounds = array<i64: 1, 128>}, {pipeline_mode = #tpu.pipeline_mode<synchronous>, transform_indices = @transform_4, window_bounds = array<i64: 128, 128>}, {pipeline_mode = #tpu.pipeline_mode<synchronous>, transform_indices = @transform_5, window_bounds = array<i64: 1, 128>}, {pipeline_mode = #tpu.pipeline_mode<synchronous>, transform_indices = @transform_6, window_bounds = array<i64: 1, 128>}, {pipeline_mode = #tpu.pipeline_mode<synchronous>, transform_indices = @transform_7, window_bounds = array<i64: 1, 128>}, {transform_indices = @transform_8, window_bounds = array<i64: 16, 128>}]} {
    %c0_i32 = arith.constant 0 : i32
    %0 = arith.cmpi eq, %arg1, %c0_i32 : i32
    %1 = arith.extui %0 : i1 to i32
    %c0_i32_0 = arith.constant 0 : i32
    %2 = arith.cmpi ne, %1, %c0_i32_0 : i32
    scf.if %2 {
      %cst_10 = arith.constant 0.000000e+00 : f32
      %13 = vector.broadcast %cst_10 : f32 to vector<16x128xf32>
      %c0_11 = arith.constant 0 : index
      %c0_12 = arith.constant 0 : index
      %14 = vector.load %arg11[%c0_11, %c0_12] : memref<16x128xf32, #tpu.memory_space<vmem>>, vector<16x128xf32>
      tpu.vector_store %arg11[%c0_11, %c0_12], %13 {strides = array<i32>} : memref<16x128xf32, #tpu.memory_space<vmem>>, vector<16x128xf32>,
    } else {
    }
    %c0 = arith.constant 0 : index
    %c0_1 = arith.constant 0 : index
    %3 = vector.load %arg11[%c0, %c0_1] : memref<16x128xf32, #tpu.memory_space<vmem>>, vector<16x128xf32>
    %c0_2 = arith.constant 0 : index
    %c0_3 = arith.constant 0 : index
    %4 = vector.load %arg2[%c0_2, %c0_3] : memref<16x16xbf16, #tpu.memory_space<vmem>>, vector<16x16xbf16>
    %c0_4 = arith.constant 0 : index
    %c0_5 = arith.constant 0 : index
    %5 = vector.load %arg3[%c0_4, %c0_5] : memref<16x128xf32, #tpu.memory_space<vmem>>, vector<16x128xf32>
    %6 = arith.truncf %5 : vector<16x128xf32> to vector<16x128xbf16>
    %cst = arith.constant dense<0.000000e+00> : vector<16x128xf32>
    %7 = tpu.matmul %4, %6, %cst {dimension_numbers = #tpu.dot_dimension_numbers<[1], [0], [0], [1], [0, 0, 1, 1], [], []>} : vector<16x16xbf16>, vector<16x128xbf16>, vector<16x128xf32> -> vector<16x128xf32>
    %8 = arith.addf %3, %7 : vector<16x128xf32>
    %c0_6 = arith.constant 0 : index
    %c0_7 = arith.constant 0 : index
    %9 = vector.load %arg11[%c0_6, %c0_7] : memref<16x128xf32, #tpu.memory_space<vmem>>, vector<16x128xf32>
    tpu.vector_store %arg11[%c0_6, %c0_7], %8 {strides = array<i32>} : memref<16x128xf32, #tpu.memory_space<vmem>>, vector<16x128xf32>,
    %c0_i32_8 = arith.constant 0 : i32
    %10 = arith.cmpi eq, %arg1, %c0_i32_8 : i32
    %11 = arith.extui %10 : i1 to i32
    %c0_i32_9 = arith.constant 0 : i32
    %12 = arith.cmpi ne, %11, %c0_i32_9 : i32
    scf.if %12 {
      %c0_10 = arith.constant 0 : index
      %c0_11 = arith.constant 0 : index
      %13 = vector.load %arg11[%c0_10, %c0_11] : memref<16x128xf32, #tpu.memory_space<vmem>>, vector<16x128xf32>
      %14 = arith.truncf %13 : vector<16x128xf32> to vector<16x128xbf16>
      %c0_12 = arith.constant 0 : index
      %c0_13 = arith.constant 0 : index
      %15 = vector.load %arg4[%c0_12, %c0_13] : memref<128x128xf32, #tpu.memory_space<vmem>>, vector<128x128xf32>
      %16 = arith.truncf %15 : vector<128x128xf32> to vector<128x128xbf16>
      %cst_14 = arith.constant dense<0.000000e+00> : vector<16x128xf32>
      %17 = tpu.matmul %14, %16, %cst_14 {dimension_numbers = #tpu.dot_dimension_numbers<[1], [0], [0], [1], [0, 0, 1, 1], [], []>} : vector<16x128xbf16>, vector<128x128xbf16>, vector<16x128xf32> -> vector<16x128xf32>
      %c0_15 = arith.constant 0 : index
      %c0_16 = arith.constant 0 : index
      %18 = vector.load %arg5[%c0_15, %c0_16] : memref<1x128xf32, #tpu.memory_space<vmem>>, vector<1x128xf32>
      %19 = vector.broadcast %18 : vector<1x128xf32> to vector<16x128xf32>
      %20 = arith.addf %17, %19 : vector<16x128xf32>
      %cst_17 = arith.constant 0.000000e+00 : f32
      %21 = vector.broadcast %cst_17 : f32 to vector<16x128xf32>
      %22 = arith.maximumf %20, %21 : vector<16x128xf32>
      %23 = arith.truncf %22 : vector<16x128xf32> to vector<16x128xbf16>
      %c0_18 = arith.constant 0 : index
      %c0_19 = arith.constant 0 : index
      %24 = vector.load %arg6[%c0_18, %c0_19] : memref<128x128xf32, #tpu.memory_space<vmem>>, vector<128x128xf32>
      %25 = arith.truncf %24 : vector<128x128xf32> to vector<128x128xbf16>
      %cst_20 = arith.constant dense<0.000000e+00> : vector<16x128xf32>
      %26 = tpu.matmul %23, %25, %cst_20 {dimension_numbers = #tpu.dot_dimension_numbers<[1], [0], [0], [1], [0, 0, 1, 1], [], []>} : vector<16x128xbf16>, vector<128x128xbf16>, vector<16x128xf32> -> vector<16x128xf32>
      %c0_21 = arith.constant 0 : index
      %c0_22 = arith.constant 0 : index
      %27 = vector.load %arg7[%c0_21, %c0_22] : memref<1x128xf32, #tpu.memory_space<vmem>>, vector<1x128xf32>
      %28 = vector.broadcast %27 : vector<1x128xf32> to vector<16x128xf32>
      %29 = arith.addf %26, %28 : vector<16x128xf32>
      %cst_23 = arith.constant 0.000000e+00 : f32
      %30 = vector.broadcast %cst_23 : f32 to vector<16x128xf32>
      %31 = arith.cmpf ogt, %29, %30 : vector<16x128xf32>
      %cst_24 = arith.constant 0.000000e+00 : f32
      %32 = vector.broadcast %cst_24 : f32 to vector<16x128xf32>
      %33 = arith.minimumf %29, %32 : vector<16x128xf32>
      %34 = math.exp %33 : vector<16x128xf32>
      %cst_25 = arith.constant 1.000000e+00 : f32
      %35 = vector.broadcast %cst_25 : f32 to vector<16x128xf32>
      %36 = arith.subf %34, %35 : vector<16x128xf32>
      %37 = arith.select %31, %29, %36 : vector<16x128xi1>, vector<16x128xf32>
      %c0_26 = arith.constant 0 : index
      %c0_27 = arith.constant 0 : index
      %38 = vector.load %arg8[%c0_26, %c0_27] : memref<1x128xf32, #tpu.memory_space<vmem>>, vector<1x128xf32>
      %39 = vector.broadcast %38 : vector<1x128xf32> to vector<16x128xf32>
      %40 = arith.mulf %37, %39 : vector<16x128xf32>
      %c0_28 = arith.constant 0 : index
      %c0_29 = arith.constant 0 : index
      %41 = vector.load %arg9[%c0_28, %c0_29] : memref<1x128xf32, #tpu.memory_space<vmem>>, vector<1x128xf32>
      %42 = vector.broadcast %41 : vector<1x128xf32> to vector<16x128xf32>
      %43 = arith.addf %40, %42 : vector<16x128xf32>
      %44 = arith.mulf %43, %43 : vector<16x128xf32>
      %cst_30 = arith.constant dense<0.000000e+00> : vector<16xf32>
      %45 = vector.multi_reduction <add>, %44, %cst_30 [1] : vector<16x128xf32> to vector<16xf32>
      %46 = vector.shape_cast %45 : vector<16xf32> to vector<16x1xf32>
      %47 = math.sqrt %46 : vector<16x1xf32>
      %cst_31 = arith.constant 5.000000e-04 : f32
      %48 = vector.broadcast %cst_31 : f32 to vector<16x1xf32>
      %49 = arith.maximumf %47, %48 : vector<16x1xf32>
      %50 = tpu.reciprocal %49 {approx = true} : vector<16x1xf32> -> vector<16x1xf32>
      %51 = vector.broadcast %50 : vector<16x1xf32> to vector<16x128xf32>
      %52 = arith.mulf %43, %51 : vector<16x128xf32>
      %c0_32 = arith.constant 0 : index
      %c0_33 = arith.constant 0 : index
      %53 = vector.load %arg10[%c0_32, %c0_33] : memref<16x128xf32, #tpu.memory_space<vmem>>, vector<16x128xf32>
      tpu.vector_store %arg10[%c0_32, %c0_33], %52 {strides = array<i32>} : memref<16x128xf32, #tpu.memory_space<vmem>>, vector<16x128xf32>,
    } else {
    }
    return
  }
  func.func @transform_0(%arg0: i32, %arg1: i32) -> (i32, i32) {
    %c0_i32 = arith.constant 0 : i32
    return %arg0, %arg1 : i32, i32
  }
  func.func @transform_1(%arg0: i32, %arg1: i32) -> (i32, i32) {
    %c0_i32 = arith.constant 0 : i32
    %c0_i32_0 = arith.constant 0 : i32
    return %arg1, %c0_i32 : i32, i32
  }
  func.func @transform_2(%arg0: i32, %arg1: i32) -> (i32, i32) {
    %c0_i32 = arith.constant 0 : i32
    %c0_i32_0 = arith.constant 0 : i32
    %c0_i32_1 = arith.constant 0 : i32
    return %c0_i32, %c0_i32_0 : i32, i32
  }
  func.func @transform_3(%arg0: i32, %arg1: i32) -> (i32, i32) {
    %c0_i32 = arith.constant 0 : i32
    %c0_i32_0 = arith.constant 0 : i32
    %c0_i32_1 = arith.constant 0 : i32
    return %c0_i32, %c0_i32_0 : i32, i32
  }
  func.func @transform_4(%arg0: i32, %arg1: i32) -> (i32, i32) {
    %c0_i32 = arith.constant 0 : i32
    %c0_i32_0 = arith.constant 0 : i32
    %c0_i32_1 = arith.constant 0 : i32
    return %c0_i32, %c0_i32_0 : i32, i32
  }
  func.func @transform_5(%arg0: i32, %arg1: i32) -> (i32, i32) {
    %c0_i32 = arith.constant 0 : i32
    %c0_i32_0 = arith.constant 0 : i32
    %c0_i32_1 = arith.constant 0 : i32
    return %c0_i32, %c0_i32_0 : i32, i32
  }
  func.func @transform_6(%arg0: i32, %arg1: i32) -> (i32, i32) {
    %c0_i32 = arith.constant 0 : i32
    %c0_i32_0 = arith.constant 0 : i32
    %c0_i32_1 = arith.constant 0 : i32
    return %c0_i32, %c0_i32_0 : i32, i32
  }
  func.func @transform_7(%arg0: i32, %arg1: i32) -> (i32, i32) {
    %c0_i32 = arith.constant 0 : i32
    %c0_i32_0 = arith.constant 0 : i32
    %c0_i32_1 = arith.constant 0 : i32
    return %c0_i32, %c0_i32_0 : i32, i32
  }
  func.func @transform_8(%arg0: i32, %arg1: i32) -> (i32, i32) {
    %c0_i32 = arith.constant 0 : i32
    %c0_i32_0 = arith.constant 0 : i32
    return %arg0, %c0_i32 : i32, i32
  }
}

module attributes {stable_mosaic.version = 11 : i64} {
  func.func @_gin_layer_kernel(%arg0: i32, %arg1: i32, %arg2: memref<16x16xbf16, #tpu.memory_space<vmem>>, %arg3: memref<16x128xf32, #tpu.memory_space<vmem>>, %arg4: memref<128x128xf32, #tpu.memory_space<vmem>>, %arg5: memref<1x128xf32, #tpu.memory_space<vmem>>, %arg6: memref<128x128xf32, #tpu.memory_space<vmem>>, %arg7: memref<1x128xf32, #tpu.memory_space<vmem>>, %arg8: memref<1x128xf32, #tpu.memory_space<vmem>>, %arg9: memref<1x128xf32, #tpu.memory_space<vmem>>, %arg10: memref<16x128xf32, #tpu.memory_space<vmem>>, %arg11: memref<16x128xf32, #tpu.memory_space<vmem>>) attributes {dimension_semantics = [#tpu.dimension_semantics<parallel>, #tpu.dimension_semantics<arbitrary>], iteration_bounds = array<i64: 1, 1>, scalar_prefetch = 0 : i64, scratch_operands = 1 : i64, tpu.core_type = #tpu.core_type<tc>, window_params = [{transform_indices = @transform_0, window_bounds = array<i64: 16, 16>}, {transform_indices = @transform_1, window_bounds = array<i64: 16, 128>}, {pipeline_mode = #tpu.pipeline_mode<synchronous>, transform_indices = @transform_2, window_bounds = array<i64: 128, 128>}, {pipeline_mode = #tpu.pipeline_mode<synchronous>, transform_indices = @transform_3, window_bounds = array<i64: 1, 128>}, {pipeline_mode = #tpu.pipeline_mode<synchronous>, transform_indices = @transform_4, window_bounds = array<i64: 128, 128>}, {pipeline_mode = #tpu.pipeline_mode<synchronous>, transform_indices = @transform_5, window_bounds = array<i64: 1, 128>}, {pipeline_mode = #tpu.pipeline_mode<synchronous>, transform_indices = @transform_6, window_bounds = array<i64: 1, 128>}, {pipeline_mode = #tpu.pipeline_mode<synchronous>, transform_indices = @transform_7, window_bounds = array<i64: 1, 128>}, {transform_indices = @transform_8, window_bounds = array<i64: 16, 128>}]} {
    %c0_i32 = arith.constant 0 : i32
    %0 = arith.cmpi eq, %arg1, %c0_i32 : i32
    %1 = arith.extui %0 : i1 to i32
    %c0_i32_0 = arith.constant 0 : i32
    %2 = arith.cmpi ne, %1, %c0_i32_0 : i32
    scf.if %2 {
      %cst_10 = arith.constant 0.000000e+00 : f32
      %13 = vector.broadcast %cst_10 : f32 to vector<16x128xf32>
      %c0_11 = arith.constant 0 : index
      %c0_12 = arith.constant 0 : index
      %14 = vector.load %arg11[%c0_11, %c0_12] : memref<16x128xf32, #tpu.memory_space<vmem>>, vector<16x128xf32>
      tpu.vector_store %arg11[%c0_11, %c0_12], %13 {strides = array<i32>} : memref<16x128xf32, #tpu.memory_space<vmem>>, vector<16x128xf32>,
    } else {
    }
    %c0 = arith.constant 0 : index
    %c0_1 = arith.constant 0 : index
    %3 = vector.load %arg11[%c0, %c0_1] : memref<16x128xf32, #tpu.memory_space<vmem>>, vector<16x128xf32>
    %c0_2 = arith.constant 0 : index
    %c0_3 = arith.constant 0 : index
    %4 = vector.load %arg2[%c0_2, %c0_3] : memref<16x16xbf16, #tpu.memory_space<vmem>>, vector<16x16xbf16>
    %c0_4 = arith.constant 0 : index
    %c0_5 = arith.constant 0 : index
    %5 = vector.load %arg3[%c0_4, %c0_5] : memref<16x128xf32, #tpu.memory_space<vmem>>, vector<16x128xf32>
    %6 = arith.truncf %5 : vector<16x128xf32> to vector<16x128xbf16>
    %cst = arith.constant dense<0.000000e+00> : vector<16x128xf32>
    %7 = tpu.matmul %4, %6, %cst {dimension_numbers = #tpu.dot_dimension_numbers<[1], [0], [0], [1], [0, 0, 1, 1], [], []>} : vector<16x16xbf16>, vector<16x128xbf16>, vector<16x128xf32> -> vector<16x128xf32>
    %8 = arith.addf %3, %7 : vector<16x128xf32>
    %c0_6 = arith.constant 0 : index
    %c0_7 = arith.constant 0 : index
    %9 = vector.load %arg11[%c0_6, %c0_7] : memref<16x128xf32, #tpu.memory_space<vmem>>, vector<16x128xf32>
    tpu.vector_store %arg11[%c0_6, %c0_7], %8 {strides = array<i32>} : memref<16x128xf32, #tpu.memory_space<vmem>>, vector<16x128xf32>,
    %c0_i32_8 = arith.constant 0 : i32
    %10 = arith.cmpi eq, %arg1, %c0_i32_8 : i32
    %11 = arith.extui %10 : i1 to i32
    %c0_i32_9 = arith.constant 0 : i32
    %12 = arith.cmpi ne, %11, %c0_i32_9 : i32
    scf.if %12 {
      %c0_10 = arith.constant 0 : index
      %c0_11 = arith.constant 0 : index
      %13 = vector.load %arg11[%c0_10, %c0_11] : memref<16x128xf32, #tpu.memory_space<vmem>>, vector<16x128xf32>
      %14 = arith.truncf %13 : vector<16x128xf32> to vector<16x128xbf16>
      %c0_12 = arith.constant 0 : index
      %c0_13 = arith.constant 0 : index
      %15 = vector.load %arg4[%c0_12, %c0_13] : memref<128x128xf32, #tpu.memory_space<vmem>>, vector<128x128xf32>
      %16 = arith.truncf %15 : vector<128x128xf32> to vector<128x128xbf16>
      %cst_14 = arith.constant dense<0.000000e+00> : vector<16x128xf32>
      %17 = tpu.matmul %14, %16, %cst_14 {dimension_numbers = #tpu.dot_dimension_numbers<[1], [0], [0], [1], [0, 0, 1, 1], [], []>} : vector<16x128xbf16>, vector<128x128xbf16>, vector<16x128xf32> -> vector<16x128xf32>
      %c0_15 = arith.constant 0 : index
      %c0_16 = arith.constant 0 : index
      %18 = vector.load %arg5[%c0_15, %c0_16] : memref<1x128xf32, #tpu.memory_space<vmem>>, vector<1x128xf32>
      %19 = vector.broadcast %18 : vector<1x128xf32> to vector<16x128xf32>
      %20 = arith.addf %17, %19 : vector<16x128xf32>
      %cst_17 = arith.constant 0.000000e+00 : f32
      %21 = vector.broadcast %cst_17 : f32 to vector<16x128xf32>
      %22 = arith.maximumf %20, %21 : vector<16x128xf32>
      %23 = arith.truncf %22 : vector<16x128xf32> to vector<16x128xbf16>
      %c0_18 = arith.constant 0 : index
      %c0_19 = arith.constant 0 : index
      %24 = vector.load %arg6[%c0_18, %c0_19] : memref<128x128xf32, #tpu.memory_space<vmem>>, vector<128x128xf32>
      %25 = arith.truncf %24 : vector<128x128xf32> to vector<128x128xbf16>
      %cst_20 = arith.constant dense<0.000000e+00> : vector<16x128xf32>
      %26 = tpu.matmul %23, %25, %cst_20 {dimension_numbers = #tpu.dot_dimension_numbers<[1], [0], [0], [1], [0, 0, 1, 1], [], []>} : vector<16x128xbf16>, vector<128x128xbf16>, vector<16x128xf32> -> vector<16x128xf32>
      %c0_21 = arith.constant 0 : index
      %c0_22 = arith.constant 0 : index
      %27 = vector.load %arg7[%c0_21, %c0_22] : memref<1x128xf32, #tpu.memory_space<vmem>>, vector<1x128xf32>
      %28 = vector.broadcast %27 : vector<1x128xf32> to vector<16x128xf32>
      %29 = arith.addf %26, %28 : vector<16x128xf32>
      %cst_23 = arith.constant 0.000000e+00 : f32
      %30 = vector.broadcast %cst_23 : f32 to vector<16x128xf32>
      %31 = arith.cmpf ogt, %29, %30 : vector<16x128xf32>
      %cst_24 = arith.constant 0.000000e+00 : f32
      %32 = vector.broadcast %cst_24 : f32 to vector<16x128xf32>
      %33 = arith.minimumf %29, %32 : vector<16x128xf32>
      %34 = math.exp %33 : vector<16x128xf32>
      %cst_25 = arith.constant 1.000000e+00 : f32
      %35 = vector.broadcast %cst_25 : f32 to vector<16x128xf32>
      %36 = arith.subf %34, %35 : vector<16x128xf32>
      %37 = arith.select %31, %29, %36 : vector<16x128xi1>, vector<16x128xf32>
      %c0_26 = arith.constant 0 : index
      %c0_27 = arith.constant 0 : index
      %38 = vector.load %arg8[%c0_26, %c0_27] : memref<1x128xf32, #tpu.memory_space<vmem>>, vector<1x128xf32>
      %39 = vector.broadcast %38 : vector<1x128xf32> to vector<16x128xf32>
      %40 = arith.mulf %37, %39 : vector<16x128xf32>
      %c0_28 = arith.constant 0 : index
      %c0_29 = arith.constant 0 : index
      %41 = vector.load %arg9[%c0_28, %c0_29] : memref<1x128xf32, #tpu.memory_space<vmem>>, vector<1x128xf32>
      %42 = vector.broadcast %41 : vector<1x128xf32> to vector<16x128xf32>
      %43 = arith.addf %40, %42 : vector<16x128xf32>
      %c0_30 = arith.constant 0 : index
      %c0_31 = arith.constant 0 : index
      %44 = vector.load %arg10[%c0_30, %c0_31] : memref<16x128xf32, #tpu.memory_space<vmem>>, vector<16x128xf32>
      tpu.vector_store %arg10[%c0_30, %c0_31], %43 {strides = array<i32>} : memref<16x128xf32, #tpu.memory_space<vmem>>, vector<16x128xf32>,
    } else {
    }
    return
  }
  func.func @transform_0(%arg0: i32, %arg1: i32) -> (i32, i32) {
    %c0_i32 = arith.constant 0 : i32
    return %arg0, %arg1 : i32, i32
  }
  func.func @transform_1(%arg0: i32, %arg1: i32) -> (i32, i32) {
    %c0_i32 = arith.constant 0 : i32
    %c0_i32_0 = arith.constant 0 : i32
    return %arg1, %c0_i32 : i32, i32
  }
  func.func @transform_2(%arg0: i32, %arg1: i32) -> (i32, i32) {
    %c0_i32 = arith.constant 0 : i32
    %c0_i32_0 = arith.constant 0 : i32
    %c0_i32_1 = arith.constant 0 : i32
    return %c0_i32, %c0_i32_0 : i32, i32
  }
  func.func @transform_3(%arg0: i32, %arg1: i32) -> (i32, i32) {
    %c0_i32 = arith.constant 0 : i32
    %c0_i32_0 = arith.constant 0 : i32
    %c0_i32_1 = arith.constant 0 : i32
    return %c0_i32, %c0_i32_0 : i32, i32
  }
  func.func @transform_4(%arg0: i32, %arg1: i32) -> (i32, i32) {
    %c0_i32 = arith.constant 0 : i32
    %c0_i32_0 = arith.constant 0 : i32
    %c0_i32_1 = arith.constant 0 : i32
    return %c0_i32, %c0_i32_0 : i32, i32
  }
  func.func @transform_5(%arg0: i32, %arg1: i32) -> (i32, i32) {
    %c0_i32 = arith.constant 0 : i32
    %c0_i32_0 = arith.constant 0 : i32
    %c0_i32_1 = arith.constant 0 : i32
    return %c0_i32, %c0_i32_0 : i32, i32
  }
  func.func @transform_6(%arg0: i32, %arg1: i32) -> (i32, i32) {
    %c0_i32 = arith.constant 0 : i32
    %c0_i32_0 = arith.constant 0 : i32
    %c0_i32_1 = arith.constant 0 : i32
    return %c0_i32, %c0_i32_0 : i32, i32
  }
  func.func @transform_7(%arg0: i32, %arg1: i32) -> (i32, i32) {
    %c0_i32 = arith.constant 0 : i32
    %c0_i32_0 = arith.constant 0 : i32
    %c0_i32_1 = arith.constant 0 : i32
    return %c0_i32, %c0_i32_0 : i32, i32
  }
  func.func @transform_8(%arg0: i32, %arg1: i32) -> (i32, i32) {
    %c0_i32 = arith.constant 0 : i32
    %c0_i32_0 = arith.constant 0 : i32
    return %arg0, %c0_i32 : i32, i32
  }
}

</mosaic_0001>

<llo_original>
// kernel: encoder_gin_pallas.5
$region0: #{encoder_gin_pallas.5}
  #allocation0 [shape = 'u32[]', space=smem, size = 0x4, offset = 0x4, fixed_abs, tag = 'smem constant byte address 0x4 - core index']
  #allocation1 [shape = 'u32[72,128]{1,0:T(1,128)}', space=vmem, size = 0x9000, scoped, tag = 'internal scratch']
  #allocation2 [shape = 'f32[16,128]{1,0:T(8,128)}', space=vmem, size = 0x2000, scoped, tag = 'scratch operand']
  %s0 = inlined_call_operand.vmem [shape: bf16[16,16], index: 0, kind: input, shape index: {}]
  %s1 = inlined_call_operand.vmem [shape: f32[16,128], index: 1, kind: input, shape index: {}]
  %s2 = inlined_call_operand.vmem [shape: f32[128,128], index: 2, kind: input, shape index: {}]
  %s3 = inlined_call_operand.vmem [shape: f32[1,128], index: 3, kind: input, shape index: {}]
  %s4 = inlined_call_operand.vmem [shape: f32[128,128], index: 4, kind: input, shape index: {}]
  %s5 = inlined_call_operand.vmem [shape: f32[1,128], index: 5, kind: input, shape index: {}]
  %s6 = inlined_call_operand.vmem [shape: f32[1,128], index: 6, kind: input, shape index: {}]
  %s7 = inlined_call_operand.vmem [shape: f32[1,128], index: 7, kind: input, shape index: {}]
  %s8 = inlined_call_operand.vmem [shape: f32[16,128], index: 8, kind: output, shape index: {}]
  %s9 = sld [smem:[#allocation0]]
  $region50: #{encoder_gin_pallas.5} parent=0
    _
  %s11 = ssub.s32 1, %s9
  %s12 = scalar_select 0, %s11, %s9
  // Predicated region
  $region2: #{encoder_gin_pallas.5} parent=0 // pred_check
    _
  $region3: #{encoder_gin_pallas.5} parent=0 // pred_check_branch
    %14 = sbr.rel (0) target = $region5
  $region4: #{encoder_gin_pallas.5} parent=0 // pred_region
    _
  $region5: #{encoder_gin_pallas.5} parent=0 // pred_fallthru
    _
  // Predicated region
  $region6: #{encoder_gin_pallas.5} parent=0 // pred_check
    _
  $region7: #{encoder_gin_pallas.5} parent=0 // pred_check_branch
    %16 = sbr.rel (0) target = $region9
  $region8: #{encoder_gin_pallas.5} parent=0 // pred_region
    _
  $region9: #{encoder_gin_pallas.5} parent=0 // pred_fallthru
    _
  // Predicated region
  $region10: #{encoder_gin_pallas.5} parent=0 // pred_check
    _
  $region11: #{encoder_gin_pallas.5} parent=0 // pred_check_branch
    %18 = sbr.rel (0) target = $region13
  $region12: #{encoder_gin_pallas.5} parent=0 // pred_region
    _
  $region13: #{encoder_gin_pallas.5} parent=0 // pred_fallthru
    _
  // Predicated region
  $region14: #{encoder_gin_pallas.5} parent=0 // pred_check
    _
  $region15: #{encoder_gin_pallas.5} parent=0 // pred_check_branch
    %20 = sbr.rel (0) target = $region17
  $region16: #{encoder_gin_pallas.5} parent=0 // pred_region
    _
  $region17: #{encoder_gin_pallas.5} parent=0 // pred_fallthru
    _
  // Predicated region
  $region18: #{encoder_gin_pallas.5} parent=0 // pred_check
    _
  $region19: #{encoder_gin_pallas.5} parent=0 // pred_check_branch
    %22 = sbr.rel (0) target = $region21
  $region20: #{encoder_gin_pallas.5} parent=0 // pred_region
    _
  $region21: #{encoder_gin_pallas.5} parent=0 // pred_fallthru
    _
  // Predicated region
  $region22: #{encoder_gin_pallas.5} parent=0 // pred_check
    _
  $region23: #{encoder_gin_pallas.5} parent=0 // pred_check_branch
    %24 = sbr.rel (0) target = $region25
  $region24: #{encoder_gin_pallas.5} parent=0 // pred_region
    _
  $region25: #{encoder_gin_pallas.5} parent=0 // pred_fallthru
    _
  // Predicated region
  $region26: #{encoder_gin_pallas.5} parent=0 // pred_check
    _
  $region27: #{encoder_gin_pallas.5} parent=0 // pred_check_branch
    %26 = sbr.rel (0) target = $region29
  $region28: #{encoder_gin_pallas.5} parent=0 // pred_region
    _
  $region29: #{encoder_gin_pallas.5} parent=0 // pred_fallthru
    _
  // Predicated region
  $region30: #{encoder_gin_pallas.5} parent=0 // pred_check
    _
  $region31: #{encoder_gin_pallas.5} parent=0 // pred_check_branch
    %28 = sbr.rel (0) target = $region33
  $region32: #{encoder_gin_pallas.5} parent=0 // pred_region
    _
  $region33: #{encoder_gin_pallas.5} parent=0 // pred_fallthru
    _
  %p30 = scmp.eq.s32.totalorder 0, 0
  // Predicated region
  $region34: #{encoder_gin_pallas.5} parent=0 // pred_check
    %p31 = pneg %p30
  $region35: #{encoder_gin_pallas.5} parent=0 // pred_check_branch
    %33 = sbr.rel (%p31) target = $region37
  $region36: #{encoder_gin_pallas.5} parent=0 // pred_region
    %34 = vst [vmem:[#allocation2] sm:$0xff] 0.0
    %35 = vst [vmem:[#allocation2 + $0x8] sm:$0xff] 0.0
  $region37: #{encoder_gin_pallas.5} parent=0 // pred_fallthru
    _
  %v36 = vld [vmem:[#allocation2] sm:$0xff]
  %v37 = vld [vmem:[#allocation2 + $0x8] sm:$0xff]
  %v38 = vld [vmem:[%s0] sm:$0xf]
  %v39 = vld [vmem:[%s0 + $0x4] sm:$0xf]
  %v40 = vld [vmem:[%s1] sm:$0xff]
  %v41 = vld [vmem:[%s1 + $0x8] sm:$0xff]
  %v42 = vpack.c.bf16 %v41, %v40
  %v45 = vunpack.c.l.b16 %v38
  %v46 = vunpack.c.l.b16 %v39
  %v47 = vpack.c.b16 %v46, %v45
  %vm48 = vcmask 130048
  %v50 = vsel %vm48, %v47, 0
  %52 = vmatpush.bf16.msra.mxu0 0
  %53 = vmatpush.bf16.msra.mxu0 0
  %54 = vmatpush.bf16.msra.mxu0 0
  %55 = vmatpush.bf16.msra.mxu0 0
  %56 = vmatpush.bf16.msra.mxu0 0
  %57 = vmatpush.bf16.msra.mxu0 0
  %58 = vmatpush.bf16.msra.mxu0 0
  %59 = vmatpush.bf16.msra.mxu0 %v42
  %60 = vmatmul.bf16.gmra.mxu0 %v50
  %v61 = vpop.f32.mrf.mxu0
  %v62 = vadd.f32 0.0, %v61
  %v63 = vpop.f32.mrf.mxu0
  %v64 = vadd.f32 0.0, %v63
  %65 = vdwg.mxu0
  %v66 = vadd.f32 %v36, %v62
  %v67 = vadd.f32 %v37, %v64
  %68 = vst [vmem:[#allocation2] sm:$0xff] %v66
  %69 = vst [vmem:[#allocation2 + $0x8] sm:$0xff] %v67
  // Predicated region
  $region38: #{encoder_gin_pallas.5} parent=0 // pred_check
    %p70 = pneg %p30
  $region39: #{encoder_gin_pallas.5} parent=0 // pred_check_branch
    %72 = sbr.rel (%p70) target = $region41
  $region40: #{encoder_gin_pallas.5} parent=0 // pred_region
    %v73 = vld [vmem:[#allocation2] sm:$0xff]
    %v74 = vld [vmem:[#allocation2 + $0x8] sm:$0xff]
    %v75 = vpack.c.bf16 %v74, %v73
    %v76 = vld [vmem:[%s2] sm:$0xff]
    %v77 = vld [vmem:[%s2 + $0x8] sm:$0xff]
    %v78 = vld [vmem:[%s2 + $0x10] sm:$0xff]
    %v79 = vld [vmem:[%s2 + $0x18] sm:$0xff]
    %v80 = vld [vmem:[%s2 + $0x20] sm:$0xff]
    %v81 = vld [vmem:[%s2 + $0x28] sm:$0xff]
    %v82 = vld [vmem:[%s2 + $0x30] sm:$0xff]
    %v83 = vld [vmem:[%s2 + $0x38] sm:$0xff]
    %v84 = vld [vmem:[%s2 + $0x40] sm:$0xff]
    %v85 = vld [vmem:[%s2 + $0x48] sm:$0xff]
    %v86 = vld [vmem:[%s2 + $0x50] sm:$0xff]
    %v87 = vld [vmem:[%s2 + $0x58] sm:$0xff]
    %v88 = vld [vmem:[%s2 + $0x60] sm:$0xff]
    %v89 = vld [vmem:[%s2 + $0x68] sm:$0xff]
    %v90 = vld [vmem:[%s2 + $0x70] sm:$0xff]
    %v91 = vld [vmem:[%s2 + $0x78] sm:$0xff]
    %v92 = vpack.c.bf16 %v77, %v76
    %v93 = vpack.c.bf16 %v79, %v78
    %v94 = vpack.c.bf16 %v81, %v80
    %v95 = vpack.c.bf16 %v83, %v82
    %v96 = vpack.c.bf16 %v85, %v84
    %v97 = vpack.c.bf16 %v87, %v86
    %v98 = vpack.c.bf16 %v89, %v88
    %v99 = vpack.c.bf16 %v91, %v90
    %v100 = vld [vmem:[%s3] sm:$0x1]
    %v102 = vperm.slane %v100, 0
    %104 = vmatpush.bf16.msra.mxu0 %v99
    %105 = vmatpush.bf16.msra.mxu0 %v98
    %106 = vmatpush.bf16.msra.mxu0 %v97
    %107 = vmatpush.bf16.msra.mxu0 %v96
    %108 = vmatpush.bf16.msra.mxu0 %v95
    %109 = vmatpush.bf16.msra.mxu0 %v94
    %110 = vmatpush.bf16.msra.mxu0 %v93
    %111 = vmatpush.bf16.msra.mxu0 %v92
    %112 = vmatmul.bf16.gmra.mxu0 %v75
    %v113 = vpop.f32.mrf.mxu0
    %v114 = vadd.f32 %v102, %v113
    %v115 = vpop.f32.mrf.mxu0
    %v116 = vadd.f32 %v102, %v115
    %117 = vdwg.mxu0
    %v118 = vmax.f32 %v114, 0.0
    %v119 = vmax.f32 %v116, 0.0
    %v120 = vpack.c.bf16 %v119, %v118
    %v121 = vld [vmem:[%s4] sm:$0xff]
    %v122 = vld [vmem:[%s4 + $0x8] sm:$0xff]
    %v123 = vld [vmem:[%s4 + $0x10] sm:$0xff]
    %v124 = vld [vmem:[%s4 + $0x18] sm:$0xff]
    %v125 = vld [vmem:[%s4 + $0x20] sm:$0xff]
    %v126 = vld [vmem:[%s4 + $0x28] sm:$0xff]
    %v127 = vld [vmem:[%s4 + $0x30] sm:$0xff]
    %v128 = vld [vmem:[%s4 + $0x38] sm:$0xff]
    %v129 = vld [vmem:[%s4 + $0x40] sm:$0xff]
    %v130 = vld [vmem:[%s4 + $0x48] sm:$0xff]
    %v131 = vld [vmem:[%s4 + $0x50] sm:$0xff]
    %v132 = vld [vmem:[%s4 + $0x58] sm:$0xff]
    %v133 = vld [vmem:[%s4 + $0x60] sm:$0xff]
    %v134 = vld [vmem:[%s4 + $0x68] sm:$0xff]
    %v135 = vld [vmem:[%s4 + $0x70] sm:$0xff]
    %v136 = vld [vmem:[%s4 + $0x78] sm:$0xff]
    %v137 = vpack.c.bf16 %v122, %v121
    %v138 = vpack.c.bf16 %v124, %v123
    %v139 = vpack.c.bf16 %v126, %v125
    %v140 = vpack.c.bf16 %v128, %v127
    %v141 = vpack.c.bf16 %v130, %v129
    %v142 = vpack.c.bf16 %v132, %v131
    %v143 = vpack.c.bf16 %v134, %v133
    %v144 = vpack.c.bf16 %v136, %v135
    %v145 = vld [vmem:[%s5] sm:$0x1]
    %v147 = vperm.slane %v145, 0
    %149 = vmatpush.bf16.msra.mxu0 %v144
    %150 = vmatpush.bf16.msra.mxu0 %v143
    %151 = vmatpush.bf16.msra.mxu0 %v142
    %152 = vmatpush.bf16.msra.mxu0 %v141
    %153 = vmatpush.bf16.msra.mxu0 %v140
    %154 = vmatpush.bf16.msra.mxu0 %v139
    %155 = vmatpush.bf16.msra.mxu0 %v138
    %156 = vmatpush.bf16.msra.mxu0 %v137
    %157 = vmatmul.bf16.gmra.mxu0 %v120
    %v158 = vpop.f32.mrf.mxu0
    %v159 = vadd.f32 %v147, %v158
    %v160 = vpop.f32.mrf.mxu0
    %v161 = vadd.f32 %v147, %v160
    %162 = vdwg.mxu0
    %vm163 = vcmp.gt.f32.partialorder %v159, 0.0
    %vm164 = vcmp.gt.f32.partialorder %v161, 0.0
    %v165 = vmin.f32 %v159, 0.0
    %v166 = vmin.f32 %v161, 0.0
    %v167 = vmul.f32 %v165, 1.442695
    %v168 = vpow.pop %v167
    %v169 = vmul.f32 %v166, 1.442695
    %v170 = vpow.pop %v169
    %v171 = vsub.f32 %v168, 1.0
    %v172 = vsub.f32 %v170, 1.0
    %v173 = vsel %vm163, %v159, %v171
    %v174 = vsel %vm164, %v161, %v172
    %v175 = vld [vmem:[%s6] sm:$0x1]
    %v177 = vperm.slane %v175, 0
    %v179 = vmul.f32 %v173, %v177
    %v180 = vmul.f32 %v174, %v177
    %v181 = vld [vmem:[%s7] sm:$0x1]
    %v183 = vperm.slane %v181, 0
    %v185 = vadd.f32 %v179, %v183
    %v186 = vadd.f32 %v180, %v183
    %187 = vst [vmem:[%s8] sm:$0xff] %v185
    %188 = vst [vmem:[%s8 + $0x8] sm:$0xff] %v186
  $region41: #{encoder_gin_pallas.5} parent=0 // pred_fallthru
    _
  // Predicated region
  $region42: #{encoder_gin_pallas.5} parent=0 // pred_check
    _
  $region43: #{encoder_gin_pallas.5} parent=0 // pred_check_branch
    %190 = sbr.rel (0) target = $region45
  $region44: #{encoder_gin_pallas.5} parent=0 // pred_region
    _
  $region45: #{encoder_gin_pallas.5} parent=0 // pred_fallthru
    _
  // Predicated region
  $region46: #{encoder_gin_pallas.5} parent=0 // pred_check
    _
  $region47: #{encoder_gin_pallas.5} parent=0 // pred_check_branch
    %192 = sbr.rel (0) target = $region49
  $region48: #{encoder_gin_pallas.5} parent=0 // pred_region
    _
  $region49: #{encoder_gin_pallas.5} parent=0 // pred_fallthru
    _

// kernel: encoder_gin_pallas.9
$region0: #{encoder_gin_pallas.9}
  #allocation0 [shape = 'u32[]', space=smem, size = 0x4, offset = 0x4, fixed_abs, tag = 'smem constant byte address 0x4 - core index']
  #allocation1 [shape = 'u32[72,128]{1,0:T(1,128)}', space=vmem, size = 0x9000, scoped, tag = 'internal scratch']
  #allocation2 [shape = 'f32[16,128]{1,0:T(8,128)}', space=vmem, size = 0x2000, scoped, tag = 'scratch operand']
  %s0 = inlined_call_operand.vmem [shape: bf16[16,16], index: 0, kind: input, shape index: {}]
  %s1 = inlined_call_operand.vmem [shape: f32[16,128], index: 1, kind: input, shape index: {}]
  %s2 = inlined_call_operand.vmem [shape: f32[128,128], index: 2, kind: input, shape index: {}]
  %s3 = inlined_call_operand.vmem [shape: f32[1,128], index: 3, kind: input, shape index: {}]
  %s4 = inlined_call_operand.vmem [shape: f32[128,128], index: 4, kind: input, shape index: {}]
  %s5 = inlined_call_operand.vmem [shape: f32[1,128], index: 5, kind: input, shape index: {}]
  %s6 = inlined_call_operand.vmem [shape: f32[1,128], index: 6, kind: input, shape index: {}]
  %s7 = inlined_call_operand.vmem [shape: f32[1,128], index: 7, kind: input, shape index: {}]
  %s8 = inlined_call_operand.hbm [shape: f32[16,128], index: 8, kind: output, shape index: {}]
  %s9 = sld [smem:[#allocation0]]
  $region50: #{encoder_gin_pallas.9} parent=0
    _
  %s11 = ssub.s32 1, %s9
  %s12 = scalar_select 0, %s11, %s9
  $region1: #{encoder_gin_pallas.9} parent=0
    #allocation3 [shape = 'u8[8192]{0}', space=vmem, size = 0x2000, scoped, tag = 'output window, operand 0, single buffered']
    #allocation4 [shape = 's32[1]{0}', space=sflag, size = 0x4, scoped, tag = 'scoped memory for encoder_gin_pallas.9']
    %13 = vsyncpa [#allocation4], 0
    // Predicated region
    $region2: #{encoder_gin_pallas.9} parent=1 // pred_check
      _
    $region3: #{encoder_gin_pallas.9} parent=1 // pred_check_branch
      %15 = sbr.rel (0) target = $region5
    $region4: #{encoder_gin_pallas.9} parent=1 // pred_region
      _
    $region5: #{encoder_gin_pallas.9} parent=1 // pred_fallthru
      _
    // Predicated region
    $region6: #{encoder_gin_pallas.9} parent=1 // pred_check
      _
    $region7: #{encoder_gin_pallas.9} parent=1 // pred_check_branch
      %17 = sbr.rel (0) target = $region9
    $region8: #{encoder_gin_pallas.9} parent=1 // pred_region
      _
    $region9: #{encoder_gin_pallas.9} parent=1 // pred_fallthru
      _
    // Predicated region
    $region10: #{encoder_gin_pallas.9} parent=1 // pred_check
      _
    $region11: #{encoder_gin_pallas.9} parent=1 // pred_check_branch
      %19 = sbr.rel (0) target = $region13
    $region12: #{encoder_gin_pallas.9} parent=1 // pred_region
      _
    $region13: #{encoder_gin_pallas.9} parent=1 // pred_fallthru
      _
    // Predicated region
    $region14: #{encoder_gin_pallas.9} parent=1 // pred_check
      _
    $region15: #{encoder_gin_pallas.9} parent=1 // pred_check_branch
      %21 = sbr.rel (0) target = $region17
    $region16: #{encoder_gin_pallas.9} parent=1 // pred_region
      _
    $region17: #{encoder_gin_pallas.9} parent=1 // pred_fallthru
      _
    // Predicated region
    $region18: #{encoder_gin_pallas.9} parent=1 // pred_check
      _
    $region19: #{encoder_gin_pallas.9} parent=1 // pred_check_branch
      %23 = sbr.rel (0) target = $region21
    $region20: #{encoder_gin_pallas.9} parent=1 // pred_region
      _
    $region21: #{encoder_gin_pallas.9} parent=1 // pred_fallthru
      _
    // Predicated region
    $region22: #{encoder_gin_pallas.9} parent=1 // pred_check
      _
    $region23: #{encoder_gin_pallas.9} parent=1 // pred_check_branch
      %25 = sbr.rel (0) target = $region25
    $region24: #{encoder_gin_pallas.9} parent=1 // pred_region
      _
    $region25: #{encoder_gin_pallas.9} parent=1 // pred_fallthru
      _
    // Predicated region
    $region26: #{encoder_gin_pallas.9} parent=1 // pred_check
      _
    $region27: #{encoder_gin_pallas.9} parent=1 // pred_check_branch
      %27 = sbr.rel (0) target = $region29
    $region28: #{encoder_gin_pallas.9} parent=1 // pred_region
      _
    $region29: #{encoder_gin_pallas.9} parent=1 // pred_fallthru
      _
    // Predicated region
    $region30: #{encoder_gin_pallas.9} parent=1 // pred_check
      _
    $region31: #{encoder_gin_pallas.9} parent=1 // pred_check_branch
      %29 = sbr.rel (0) target = $region33
    $region32: #{encoder_gin_pallas.9} parent=1 // pred_region
      _
    $region33: #{encoder_gin_pallas.9} parent=1 // pred_fallthru
      _
    %p31 = scmp.eq.s32.totalorder 0, 0
    // Predicated region
    $region34: #{encoder_gin_pallas.9} parent=1 // pred_check
      %p32 = pneg %p31
    $region35: #{encoder_gin_pallas.9} parent=1 // pred_check_branch
      %34 = sbr.rel (%p32) target = $region37
    $region36: #{encoder_gin_pallas.9} parent=1 // pred_region
      %35 = vst [vmem:[#allocation2] sm:$0xff] 0.0
      %36 = vst [vmem:[#allocation2 + $0x8] sm:$0xff] 0.0
    $region37: #{encoder_gin_pallas.9} parent=1 // pred_fallthru
      _
    %v37 = vld [vmem:[#allocation2] sm:$0xff]
    %v38 = vld [vmem:[#allocation2 + $0x8] sm:$0xff]
    %v39 = vld [vmem:[%s0] sm:$0xf]
    %v40 = vld [vmem:[%s0 + $0x4] sm:$0xf]
    %v41 = vld [vmem:[%s1] sm:$0xff]
    %v42 = vld [vmem:[%s1 + $0x8] sm:$0xff]
    %v43 = vpack.c.bf16 %v42, %v41
    %v46 = vunpack.c.l.b16 %v39
    %v47 = vunpack.c.l.b16 %v40
    %v48 = vpack.c.b16 %v47, %v46
    %vm49 = vcmask 130048
    %v51 = vsel %vm49, %v48, 0
    %53 = vmatpush.bf16.msra.mxu0 0
    %54 = vmatpush.bf16.msra.mxu0 0
    %55 = vmatpush.bf16.msra.mxu0 0
    %56 = vmatpush.bf16.msra.mxu0 0
    %57 = vmatpush.bf16.msra.mxu0 0
    %58 = vmatpush.bf16.msra.mxu0 0
    %59 = vmatpush.bf16.msra.mxu0 0
    %60 = vmatpush.bf16.msra.mxu0 %v43
    %61 = vmatmul.bf16.gmra.mxu0 %v51
    %v62 = vpop.f32.mrf.mxu0
    %v63 = vadd.f32 0.0, %v62
    %v64 = vpop.f32.mrf.mxu0
    %v65 = vadd.f32 0.0, %v64
    %66 = vdwg.mxu0
    %v67 = vadd.f32 %v37, %v63
    %v68 = vadd.f32 %v38, %v65
    %69 = vst [vmem:[#allocation2] sm:$0xff] %v67
    %70 = vst [vmem:[#allocation2 + $0x8] sm:$0xff] %v68
    // Predicated region
    $region38: #{encoder_gin_pallas.9} parent=1 // pred_check
      %p71 = pneg %p31
    $region39: #{encoder_gin_pallas.9} parent=1 // pred_check_branch
      %73 = sbr.rel (%p71) target = $region41
    $region40: #{encoder_gin_pallas.9} parent=1 // pred_region
      %v74 = vld [vmem:[#allocation2] sm:$0xff]
      %v75 = vld [vmem:[#allocation2 + $0x8] sm:$0xff]
      %v76 = vpack.c.bf16 %v75, %v74
      %v77 = vld [vmem:[%s2] sm:$0xff]
      %v78 = vld [vmem:[%s2 + $0x8] sm:$0xff]
      %v79 = vld [vmem:[%s2 + $0x10] sm:$0xff]
      %v80 = vld [vmem:[%s2 + $0x18] sm:$0xff]
      %v81 = vld [vmem:[%s2 + $0x20] sm:$0xff]
      %v82 = vld [vmem:[%s2 + $0x28] sm:$0xff]
      %v83 = vld [vmem:[%s2 + $0x30] sm:$0xff]
      %v84 = vld [vmem:[%s2 + $0x38] sm:$0xff]
      %v85 = vld [vmem:[%s2 + $0x40] sm:$0xff]
      %v86 = vld [vmem:[%s2 + $0x48] sm:$0xff]
      %v87 = vld [vmem:[%s2 + $0x50] sm:$0xff]
      %v88 = vld [vmem:[%s2 + $0x58] sm:$0xff]
      %v89 = vld [vmem:[%s2 + $0x60] sm:$0xff]
      %v90 = vld [vmem:[%s2 + $0x68] sm:$0xff]
      %v91 = vld [vmem:[%s2 + $0x70] sm:$0xff]
      %v92 = vld [vmem:[%s2 + $0x78] sm:$0xff]
      %v93 = vpack.c.bf16 %v78, %v77
      %v94 = vpack.c.bf16 %v80, %v79
      %v95 = vpack.c.bf16 %v82, %v81
      %v96 = vpack.c.bf16 %v84, %v83
      %v97 = vpack.c.bf16 %v86, %v85
      %v98 = vpack.c.bf16 %v88, %v87
      %v99 = vpack.c.bf16 %v90, %v89
      %v100 = vpack.c.bf16 %v92, %v91
      %v101 = vld [vmem:[%s3] sm:$0x1]
      %v103 = vperm.slane %v101, 0
      %105 = vmatpush.bf16.msra.mxu0 %v100
      %106 = vmatpush.bf16.msra.mxu0 %v99
      %107 = vmatpush.bf16.msra.mxu0 %v98
      %108 = vmatpush.bf16.msra.mxu0 %v97
      %109 = vmatpush.bf16.msra.mxu0 %v96
      %110 = vmatpush.bf16.msra.mxu0 %v95
      %111 = vmatpush.bf16.msra.mxu0 %v94
      %112 = vmatpush.bf16.msra.mxu0 %v93
      %113 = vmatmul.bf16.gmra.mxu0 %v76
      %v114 = vpop.f32.mrf.mxu0
      %v115 = vadd.f32 %v103, %v114
      %v116 = vpop.f32.mrf.mxu0
      %v117 = vadd.f32 %v103, %v116
      %118 = vdwg.mxu0
      %v119 = vmax.f32 %v115, 0.0
      %v120 = vmax.f32 %v117, 0.0
      %v121 = vpack.c.bf16 %v120, %v119
      %v122 = vld [vmem:[%s4] sm:$0xff]
      %v123 = vld [vmem:[%s4 + $0x8] sm:$0xff]
      %v124 = vld [vmem:[%s4 + $0x10] sm:$0xff]
      %v125 = vld [vmem:[%s4 + $0x18] sm:$0xff]
      %v126 = vld [vmem:[%s4 + $0x20] sm:$0xff]
      %v127 = vld [vmem:[%s4 + $0x28] sm:$0xff]
      %v128 = vld [vmem:[%s4 + $0x30] sm:$0xff]
      %v129 = vld [vmem:[%s4 + $0x38] sm:$0xff]
      %v130 = vld [vmem:[%s4 + $0x40] sm:$0xff]
      %v131 = vld [vmem:[%s4 + $0x48] sm:$0xff]
      %v132 = vld [vmem:[%s4 + $0x50] sm:$0xff]
      %v133 = vld [vmem:[%s4 + $0x58] sm:$0xff]
      %v134 = vld [vmem:[%s4 + $0x60] sm:$0xff]
      %v135 = vld [vmem:[%s4 + $0x68] sm:$0xff]
      %v136 = vld [vmem:[%s4 + $0x70] sm:$0xff]
      %v137 = vld [vmem:[%s4 + $0x78] sm:$0xff]
      %v138 = vpack.c.bf16 %v123, %v122
      %v139 = vpack.c.bf16 %v125, %v124
      %v140 = vpack.c.bf16 %v127, %v126
      %v141 = vpack.c.bf16 %v129, %v128
      %v142 = vpack.c.bf16 %v131, %v130
      %v143 = vpack.c.bf16 %v133, %v132
      %v144 = vpack.c.bf16 %v135, %v134
      %v145 = vpack.c.bf16 %v137, %v136
      %v146 = vld [vmem:[%s5] sm:$0x1]
      %v148 = vperm.slane %v146, 0
      %150 = vmatpush.bf16.msra.mxu0 %v145
      %151 = vmatpush.bf16.msra.mxu0 %v144
      %152 = vmatpush.bf16.msra.mxu0 %v143
      %153 = vmatpush.bf16.msra.mxu0 %v142
      %154 = vmatpush.bf16.msra.mxu0 %v141
      %155 = vmatpush.bf16.msra.mxu0 %v140
      %156 = vmatpush.bf16.msra.mxu0 %v139
      %157 = vmatpush.bf16.msra.mxu0 %v138
      %158 = vmatmul.bf16.gmra.mxu0 %v121
      %v159 = vpop.f32.mrf.mxu0
      %v160 = vadd.f32 %v148, %v159
      %v161 = vpop.f32.mrf.mxu0
      %v162 = vadd.f32 %v148, %v161
      %163 = vdwg.mxu0
      %vm164 = vcmp.gt.f32.partialorder %v160, 0.0
      %vm165 = vcmp.gt.f32.partialorder %v162, 0.0
      %v166 = vmin.f32 %v160, 0.0
      %v167 = vmin.f32 %v162, 0.0
      %v168 = vmul.f32 %v166, 1.442695
      %v169 = vpow.pop %v168
      %v170 = vmul.f32 %v167, 1.442695
      %v171 = vpow.pop %v170
      %v172 = vsub.f32 %v169, 1.0
      %v173 = vsub.f32 %v171, 1.0
      %v174 = vsel %vm164, %v160, %v172
      %v175 = vsel %vm165, %v162, %v173
      %v176 = vld [vmem:[%s6] sm:$0x1]
      %v178 = vperm.slane %v176, 0
      %v180 = vmul.f32 %v174, %v178
      %v181 = vmul.f32 %v175, %v178
      %v182 = vld [vmem:[%s7] sm:$0x1]
      %v184 = vperm.slane %v182, 0
      %v186 = vadd.f32 %v180, %v184
      %v187 = vadd.f32 %v181, %v184
      %v188 = vmul.f32 %v186, %v186
      %v189 = vmul.f32 %v187, %v187
      %190 = vadd.xlane.f32.xlu0 %v188
      %v191 = vpop.xlane.xlu0 %190
      %192 = vadd.xlane.f32.xlu0 %v189
      %v193 = vpop.xlane.xlu0 %192
      %v194 = vrsqrt.pop %v191
      %v195 = vmul.f32 %v194, %v191
      %v196 = vmul.f32 %v195, %v194
      %v197 = vmul.f32 0.5, %v196
      %v198 = vsub.f32 1.5, %v197
      %v199 = vmul.f32 %v194, %v198
      %v200 = vmul.f32 %v191, %v199
      %vm201 = vcmp.eq.f32.partialorder %v191, inf
      %v202 = vsel %vm201, %v191, %v200
      %vm203 = vcmp.eq.f32.partialorder %v191, 0.0
      %v204 = vand.u32 %v191, 2147483648
      %v205 = vsel %vm203, %v204, %v202
      %v206 = vrsqrt.pop %v193
      %v207 = vmul.f32 %v206, %v193
      %v208 = vmul.f32 %v207, %v206
      %v209 = vmul.f32 0.5, %v208
      %v210 = vsub.f32 1.5, %v209
      %v211 = vmul.f32 %v206, %v210
      %v212 = vmul.f32 %v193, %v211
      %vm213 = vcmp.eq.f32.partialorder %v193, inf
      %v214 = vsel %vm213, %v193, %v212
      %vm215 = vcmp.eq.f32.partialorder %v193, 0.0
      %v216 = vand.u32 %v193, 2147483648
      %v217 = vsel %vm215, %v216, %v214
      %v218 = vmax.f32 %v205, 0.0005
      %v219 = vmax.f32 %v217, 0.0005
      %v220 = vrcp.pop %v218
      %v221 = vrcp.pop %v219
      %v222 = vmul.f32 %v186, %v220
      %v223 = vmul.f32 %v187, %v221
      %224 = vst [vmem:[#allocation3] sm:$0xff] %v222
      %225 = vst [vmem:[#allocation3 + $0x8] sm:$0xff] %v223
    $region41: #{encoder_gin_pallas.9} parent=1 // pred_fallthru
      _
    // Predicated region
    $region42: #{encoder_gin_pallas.9} parent=1 // pred_check
      _
    $region43: #{encoder_gin_pallas.9} parent=1 // pred_check_branch
      %227 = sbr.rel (0) target = $region45
    $region44: #{encoder_gin_pallas.9} parent=1 // pred_region
      %229 = vsyncadd [#allocation4], 0
      %s230 = sshll.u32 [#allocation3], 4
      %s231 = int_to_ptr.vmem [resolvable:$true] %s230
      %s232 = sshll.u32 %s8, 4
      %s233 = int_to_ptr.hbm [resolvable:$true] %s232
      %238 = dma.vmem_to_hbm [thread:$0]  %s231, 256, %s233, [#allocation4], 128, 128, 8
    $region45: #{encoder_gin_pallas.9} parent=1 // pred_fallthru
      _
    // Predicated region
    $region46: #{encoder_gin_pallas.9} parent=1 // pred_check
      _
    $region47: #{encoder_gin_pallas.9} parent=1 // pred_check_branch
      %240 = sbr.rel (0) target = $region49
    $region48: #{encoder_gin_pallas.9} parent=1 // pred_region
      %242 = dma.done [#allocation4], 256
    $region49: #{encoder_gin_pallas.9} parent=1 // pred_fallthru
      _
    %243 = vsyncpa [#allocation4], 1

</llo_original>
